<compile_context>
chip_gen: v7x
topology: tpu7x:2x2x1
jax: 0.10.0
libtpu: 0.0.40
codegen_flags: <defaults>
</compile_context>

<pallas_src>
import functools

import jax
import jax.numpy as jnp
from jax import lax
from jax.experimental import pallas as pl
from jax.experimental.pallas import tpu as pltpu


def se_kernel(x_ref, w1_ref, w2t_ref, o_ref, *, hw, use_mxu, chunk):
    # x_ref: (Bb, C, HW_pad)   w1_ref: (Cr, C)   w2t_ref: (Cr, C)
    Bb, C, HW_pad = x_ref.shape
    Cr = w1_ref.shape[0]

    # --- Squeeze: chunked f32 accumulation over the spatial (lane) axis.
    # Only a (Bb, C) f32 accumulator stays live; no full-tile f32 temp.
    acc = jnp.zeros((Bb, C), jnp.float32)
    start = 0
    while start < HW_pad:  # static unroll; chunk boundaries are compile-time
        sz = min(chunk, HW_pad - start)
        acc = acc + jnp.sum(
            x_ref[:, :, start:start + sz].astype(jnp.float32), axis=-1)
        start += sz
    # Padding lanes are zero, so divide by the real HW.
    pooled = acc * (1.0 / hw)                                        # (Bb, C)

    w1 = w1_ref[...].astype(jnp.float32)                             # (Cr, C)
    w2t = w2t_ref[...].astype(jnp.float32)                           # (Cr, C)

    if use_mxu:
        # Production SE sizes: both FCs on the MXU (K = C / K = Cr).
        h = lax.dot_general(pooled, w1, (((1,), (1,)), ((), ())),
                            preferred_element_type=jnp.float32)      # (Bb, Cr)
        h = jnp.maximum(h, 0.0)
        s = lax.dot_general(h, w2t, (((1,), (0,)), ((), ())),
                            preferred_element_type=jnp.float32)      # (Bb, C)
    else:
        # Tiny Cr: VPU path, C stays on the lane axis the whole way.
        # FC1: per hidden unit, one lane-axis reduction over C.
        # FC2: accumulate over Cr with (Bb, C) broadcast-multiplies.
        s = jnp.zeros((Bb, C), jnp.float32)
        for j in range(Cr):
            hj = jnp.sum(pooled * w1[j, :][None, :], axis=-1,
                         keepdims=True)                              # (Bb, 1)
            hj = jnp.maximum(hj, 0.0)
            s = s + hj * w2t[j, :][None, :]                          # (Bb, C)

    s = jax.nn.sigmoid(s)                                            # (Bb, C)

    # --- Scale: re-read the tile and multiply in the input's native dtype.
    x = x_ref[...]
    o_ref[...] = (x * s[:, :, None].astype(x.dtype)).astype(o_ref.dtype)


def _choose_tiling(B, C, HW_pad, itemsize):
    """Pick (steps, Bb) for the batch-tiled grid.

    Targets ~2 MiB per x block (the output block is the same size) so the
    double-buffered in+out pipeline stays inside the scoped-VMEM default on
    every generation, with enough steps (>=4, and >=2 per TensorCore on
    multi-core chips) to overlap DMA-in / compute / DMA-out of this purely
    HBM-bound op.  Problems below ~1 MiB total stay in a single step.
    """
    per_batch = C * HW_pad * itemsize
    total = B * per_batch

    num_cores = 1
    try:
        info = pltpu.get_tpu_info()
        for attr in ("num_cores", "core_count", "num_tensorcores",
                     "tensorcore_count"):
            v = getattr(info, attr, None)
            if v:
                num_cores = int(v)
                break
    except Exception:  # mock / AOT / non-TPU tracing: fall back to 1 core
        pass

    budget = 2 * 1024 * 1024  # bytes per x block; safe on v5e/v6e/v7x

    min_steps = 1
    if total >= (1 << 20):  # only split when there is data to amortize it
        min_steps = max(4, 2 * num_cores)

    steps = max(min_steps, pl.cdiv(total, budget))
    steps = min(steps, B)

    # Block size = a divisor of B: uniform blocks, no partial-block handling,
    # and no silent inflation of the step count up to B.
    Bb = max(1, B // steps)
    while B % Bb != 0:
        Bb -= 1
    return B // Bb, Bb
    # TODO(synk): for B so small that a single batch row exceeds the budget,
    # add a second (channel or two-pass spatial) tiling axis.


def se_layer(x, w1, w2, *, donate_input=False):
    """SELayer forward.

    x:  (B, C, H, W)
    w1: (C//r, C)  -- nn.Linear(channel, channel // reduction, bias=False).weight
    w2: (C, C//r)  -- nn.Linear(channel // reduction, channel, bias=False).weight
    """
    B, C, H, W = x.shape
    HW = H * W
    Cr = w1.shape[0]
    assert w1.shape == (Cr, C) and w2.shape == (C, Cr)

    # HW on the lane axis, padded to a multiple of 128 -> unmasked stores.
    HW_pad = ((HW + 127) // 128) * 128
    x_flat = x.reshape(B, C, HW)
    if HW_pad != HW:
        x_flat = jnp.pad(x_flat, ((0, 0), (0, 0), (0, HW_pad - HW)))

    # Pass W2 transposed so C is the lane axis inside the kernel on both paths.
    w2t = jnp.transpose(w2)                                          # (Cr, C)

    steps, Bb = _choose_tiling(B, C, HW_pad, x.dtype.itemsize)
    use_mxu = (C >= 128 and Cr >= 8)

    kernel = functools.partial(se_kernel, hw=float(HW), use_mxu=use_mxu,
                               chunk=512)

    extra = {}
    if donate_input and HW_pad == HW:
        # Safe only because in/out BlockSpecs are identical and each block is
        # fully read before its aliased write.
        extra["input_output_aliases"] = {0: 0}

    out = pl.pallas_call(
        kernel,
        out_shape=jax.ShapeDtypeStruct((B, C, HW_pad), x.dtype),
        grid_spec=pltpu.PrefetchScalarGridSpec(
            num_scalar_prefetch=0,
            grid=(steps,),
            in_specs=[
                pl.BlockSpec((Bb, C, HW_pad), lambda b: (b, 0, 0)),
                pl.BlockSpec((Cr, C), lambda b: (0, 0)),
                pl.BlockSpec((Cr, C), lambda b: (0, 0)),
            ],
            out_specs=pl.BlockSpec((Bb, C, HW_pad), lambda b: (b, 0, 0)),
        ),
        compiler_params=pltpu.CompilerParams(
            dimension_semantics=("parallel",)),
        **extra,
    )(x_flat, w1, w2t)

    if HW_pad != HW:
        out = out[:, :, :HW]
    return out.reshape(B, C, H, W)


def se_layer_ref(x, w1, w2):
    """Pure-JAX reference matching the PyTorch forward (nn.Linear weight layout)."""
    pooled = jnp.mean(x.astype(jnp.float32), axis=(2, 3))            # (B, C)
    h = jnp.maximum(pooled @ w1.astype(jnp.float32).T, 0.0)          # (B, Cr)
    s = jax.nn.sigmoid(h @ w2.astype(jnp.float32).T)                 # (B, C)
    return (x * s[:, :, None, None].astype(x.dtype)).astype(x.dtype)


if __name__ == "__main__":
    # Module config: channel=32, reduction=16 -> hidden = 2; input (2, 32, 16, 16).
    B, C, H, W = 2, 32, 16, 16
    reduction = 16
    Cr = int(C / reduction)

    key = jax.random.PRNGKey(0)
    kx, k1, k2 = jax.random.split(key, 3)

    x = jax.random.normal(kx, (B, C, H, W), dtype=jnp.float32)
    # PyTorch-native weight layouts:
    #   nn.Linear(C, Cr, bias=False).weight -> (Cr, C)
    #   nn.Linear(Cr, C, bias=False).weight -> (C, Cr)
    w1 = jax.random.uniform(k1, (Cr, C), dtype=jnp.float32,
                            minval=-1.0 / jnp.sqrt(C), maxval=1.0 / jnp.sqrt(C))
    w2 = jax.random.uniform(k2, (C, Cr), dtype=jnp.float32,
                            minval=-1.0 / jnp.sqrt(Cr), maxval=1.0 / jnp.sqrt(Cr))

    out = jax.block_until_ready(se_layer(x, w1, w2))
    ref = se_layer_ref(x, w1, w2)

    assert out.shape == (B, C, H, W)
    assert jnp.allclose(out, ref, atol=1e-5, rtol=1e-5), "mismatch vs reference"
    print("KERNEL_OK")
</pallas_src>

<mosaic_0001>
module attributes {stable_mosaic.version = 11 : i64} {
  func.func @se_kernel(%arg0: i32, %arg1: memref<2x32x256xf32, #tpu.memory_space<vmem>>, %arg2: memref<2x32xf32, #tpu.memory_space<vmem>>, %arg3: memref<2x32xf32, #tpu.memory_space<vmem>>, %arg4: memref<2x32x256xf32, #tpu.memory_space<vmem>>) attributes {dimension_semantics = [#tpu.dimension_semantics<parallel>], iteration_bounds = array<i64: 1>, scalar_prefetch = 0 : i64, scratch_operands = 0 : i64, tpu.core_type = #tpu.core_type<tc>, window_params = [{transform_indices = @transform_0, window_bounds = array<i64: 2, 32, 256>}, {pipeline_mode = #tpu.pipeline_mode<synchronous>, transform_indices = @transform_1, window_bounds = array<i64: 2, 32>}, {pipeline_mode = #tpu.pipeline_mode<synchronous>, transform_indices = @transform_2, window_bounds = array<i64: 2, 32>}, {transform_indices = @transform_3, window_bounds = array<i64: 2, 32, 256>}]} {
    %cst = arith.constant 0.000000e+00 : f32
    %0 = vector.broadcast %cst : f32 to vector<2x32xf32>
    %c0 = arith.constant 0 : index
    %c0_0 = arith.constant 0 : index
    %c0_1 = arith.constant 0 : index
    %1 = vector.load %arg1[%c0, %c0_0, %c0_1] : memref<2x32x256xf32, #tpu.memory_space<vmem>>, vector<2x32x256xf32>
    %cst_2 = arith.constant dense<0.000000e+00> : vector<2x32xf32>
    %2 = vector.multi_reduction <add>, %1, %cst_2 [2] : vector<2x32x256xf32> to vector<2x32xf32>
    %3 = arith.addf %0, %2 : vector<2x32xf32>
    %cst_3 = arith.constant 3.906250e-03 : f32
    %4 = vector.broadcast %cst_3 : f32 to vector<2x32xf32>
    %5 = arith.mulf %3, %4 : vector<2x32xf32>
    %c0_4 = arith.constant 0 : index
    %c0_5 = arith.constant 0 : index
    %6 = vector.load %arg2[%c0_4, %c0_5] : memref<2x32xf32, #tpu.memory_space<vmem>>, vector<2x32xf32>
    %c0_6 = arith.constant 0 : index
    %c0_7 = arith.constant 0 : index
    %7 = vector.load %arg3[%c0_6, %c0_7] : memref<2x32xf32, #tpu.memory_space<vmem>>, vector<2x32xf32>
    %cst_8 = arith.constant 0.000000e+00 : f32
    %8 = vector.broadcast %cst_8 : f32 to vector<2x32xf32>
    %9 = vector.extract_strided_slice %6 {offsets = [0, 0], sizes = [1, 32], strides = [1, 1]} : vector<2x32xf32> to vector<1x32xf32>
    %10 = vector.shape_cast %9 : vector<1x32xf32> to vector<32xf32>
    %11 = vector.shape_cast %10 : vector<32xf32> to vector<1x32xf32>
    %12 = vector.broadcast %11 : vector<1x32xf32> to vector<2x32xf32>
    %13 = arith.mulf %5, %12 : vector<2x32xf32>
    %cst_9 = arith.constant dense<0.000000e+00> : vector<2xf32>
    %14 = vector.multi_reduction <add>, %13, %cst_9 [1] : vector<2x32xf32> to vector<2xf32>
    %15 = vector.shape_cast %14 : vector<2xf32> to vector<2x1xf32>
    %cst_10 = arith.constant 0.000000e+00 : f32
    %16 = vector.broadcast %cst_10 : f32 to vector<2x1xf32>
    %17 = arith.maximumf %15, %16 : vector<2x1xf32>
    %18 = vector.extract_strided_slice %7 {offsets = [0, 0], sizes = [1, 32], strides = [1, 1]} : vector<2x32xf32> to vector<1x32xf32>
    %19 = vector.shape_cast %18 : vector<1x32xf32> to vector<32xf32>
    %20 = vector.shape_cast %19 : vector<32xf32> to vector<1x32xf32>
    %21 = vector.broadcast %17 : vector<2x1xf32> to vector<2x32xf32>
    %22 = vector.broadcast %20 : vector<1x32xf32> to vector<2x32xf32>
    %23 = arith.mulf %21, %22 : vector<2x32xf32>
    %24 = arith.addf %8, %23 : vector<2x32xf32>
    %25 = vector.extract_strided_slice %6 {offsets = [1, 0], sizes = [1, 32], strides = [1, 1]} : vector<2x32xf32> to vector<1x32xf32>
    %26 = vector.shape_cast %25 : vector<1x32xf32> to vector<32xf32>
    %27 = vector.shape_cast %26 : vector<32xf32> to vector<1x32xf32>
    %28 = vector.broadcast %27 : vector<1x32xf32> to vector<2x32xf32>
    %29 = arith.mulf %5, %28 : vector<2x32xf32>
    %cst_11 = arith.constant dense<0.000000e+00> : vector<2xf32>
    %30 = vector.multi_reduction <add>, %29, %cst_11 [1] : vector<2x32xf32> to vector<2xf32>
    %31 = vector.shape_cast %30 : vector<2xf32> to vector<2x1xf32>
    %cst_12 = arith.constant 0.000000e+00 : f32
    %32 = vector.broadcast %cst_12 : f32 to vector<2x1xf32>
    %33 = arith.maximumf %31, %32 : vector<2x1xf32>
    %34 = vector.extract_strided_slice %7 {offsets = [1, 0], sizes = [1, 32], strides = [1, 1]} : vector<2x32xf32> to vector<1x32xf32>
    %35 = vector.shape_cast %34 : vector<1x32xf32> to vector<32xf32>
    %36 = vector.shape_cast %35 : vector<32xf32> to vector<1x32xf32>
    %37 = vector.broadcast %33 : vector<2x1xf32> to vector<2x32xf32>
    %38 = vector.broadcast %36 : vector<1x32xf32> to vector<2x32xf32>
    %39 = arith.mulf %37, %38 : vector<2x32xf32>
    %40 = arith.addf %24, %39 : vector<2x32xf32>
    %41 = arith.negf %40 : vector<2x32xf32>
    %42 = math.exp %41 : vector<2x32xf32>
    %cst_13 = arith.constant 1.000000e+00 : f32
    %43 = vector.broadcast %cst_13 : f32 to vector<2x32xf32>
    %44 = arith.addf %43, %42 : vector<2x32xf32>
    %45 = arith.divf %43, %44 : vector<2x32xf32>
    %c0_14 = arith.constant 0 : index
    %c0_15 = arith.constant 0 : index
    %c0_16 = arith.constant 0 : index
    %46 = vector.load %arg1[%c0_14, %c0_15, %c0_16] : memref<2x32x256xf32, #tpu.memory_space<vmem>>, vector<2x32x256xf32>
    %47 = vector.shape_cast %45 : vector<2x32xf32> to vector<2x32x1xf32>
    %48 = vector.broadcast %47 : vector<2x32x1xf32> to vector<2x32x256xf32>
    %49 = arith.mulf %46, %48 : vector<2x32x256xf32>
    %c0_17 = arith.constant 0 : index
    %c0_18 = arith.constant 0 : index
    %c0_19 = arith.constant 0 : index
    %50 = vector.load %arg4[%c0_17, %c0_18, %c0_19] : memref<2x32x256xf32, #tpu.memory_space<vmem>>, vector<2x32x256xf32>
    tpu.vector_store %arg4[%c0_17, %c0_18, %c0_19], %49 {strides = array<i32>} : memref<2x32x256xf32, #tpu.memory_space<vmem>>, vector<2x32x256xf32>,
    return
  }
  func.func @transform_0(%arg0: i32) -> (i32, i32, i32) {
    %c0_i32 = arith.constant 0 : i32
    %c0_i32_0 = arith.constant 0 : i32
    %c0_i32_1 = arith.constant 0 : i32
    return %arg0, %c0_i32, %c0_i32_0 : i32, i32, i32
  }
  func.func @transform_1(%arg0: i32) -> (i32, i32) {
    %c0_i32 = arith.constant 0 : i32
    %c0_i32_0 = arith.constant 0 : i32
    %c0_i32_1 = arith.constant 0 : i32
    return %c0_i32, %c0_i32_0 : i32, i32
  }
  func.func @transform_2(%arg0: i32) -> (i32, i32) {
    %c0_i32 = arith.constant 0 : i32
    %c0_i32_0 = arith.constant 0 : i32
    %c0_i32_1 = arith.constant 0 : i32
    return %c0_i32, %c0_i32_0 : i32, i32
  }
  func.func @transform_3(%arg0: i32) -> (i32, i32, i32) {
    %c0_i32 = arith.constant 0 : i32
    %c0_i32_0 = arith.constant 0 : i32
    %c0_i32_1 = arith.constant 0 : i32
    return %arg0, %c0_i32, %c0_i32_0 : i32, i32, i32
  }
}

</mosaic_0001>

<llo_original>
// kernel: tpu_custom_call.1
$region0: #{tpu_custom_call.1}
  #allocation0 [shape = 'u32[]', space=smem, size = 0x4, offset = 0x4, fixed_abs, tag = 'smem constant byte address 0x4 - core index']
  #allocation1 [shape = 'u32[144,128]{1,0:T(1,128)}', space=vmem, size = 0x12000, scoped, tag = 'internal scratch']
  %s0 = inlined_call_operand.hbm [shape: f32[2,32,256], index: 0, kind: input, shape index: {}]
  %s1 = inlined_call_operand.vmem [shape: f32[2,32], index: 1, kind: input, shape index: {}]
  %s2 = inlined_call_operand.vmem [shape: f32[2,32], index: 2, kind: input, shape index: {}]
  %s3 = inlined_call_operand.hbm [shape: f32[2,32,256], index: 3, kind: output, shape index: {}]
  %s4 = sld [smem:[#allocation0]]
  $region26: #{tpu_custom_call.1} parent=0
    _
  %s6 = ssub.s32 1, %s4
  %s7 = scalar_select 0, %s6, %s4
  $region1: #{tpu_custom_call.1} parent=0
    #allocation2 [shape = 'u8[65536]{0}', space=vmem, size = 0x10000, scoped, tag = 'input window, operand 0, single buffered']
    #allocation3 [shape = 's32[1]{0}', space=sflag, size = 0x4, scoped, tag = 'scoped memory for tpu_custom_call.1']
    #allocation4 [shape = 's32[1]{0}', space=sflag, size = 0x4, scoped, tag = 'scoped memory for tpu_custom_call.1']
    #allocation5 [shape = 'u8[65536]{0}', space=vmem, size = 0x10000, scoped, tag = 'output window, operand 0, single buffered']
    %8 = vsyncpa [#allocation3], 0
    %9 = vsyncpa [#allocation4], 0
    // Predicated region
    $region2: #{tpu_custom_call.1} parent=1 // pred_check
      _
    $region3: #{tpu_custom_call.1} parent=1 // pred_check_branch
      %11 = sbr.rel (0) target = $region5
    $region4: #{tpu_custom_call.1} parent=1 // pred_region
      %s13 = ssub.s32 2048, 2048
      %14 = vsyncadd [#allocation3], %s13
      %s15 = sshll.u32 [#allocation2], 4
      %s16 = int_to_ptr.vmem [resolvable:$true] %s15
      %21 = dma.hbm_to_vmem [thread:$0]  %s0, 2048, %s16, [#allocation3], 256, 256, 16
    $region5: #{tpu_custom_call.1} parent=1 // pred_fallthru
      _
    // Predicated region
    $region6: #{tpu_custom_call.1} parent=1 // pred_check
      _
    $region7: #{tpu_custom_call.1} parent=1 // pred_check_branch
      %23 = sbr.rel (0) target = $region9
    $region8: #{tpu_custom_call.1} parent=1 // pred_region
      _
    $region9: #{tpu_custom_call.1} parent=1 // pred_fallthru
      _
    // Predicated region
    $region10: #{tpu_custom_call.1} parent=1 // pred_check
      _
    $region11: #{tpu_custom_call.1} parent=1 // pred_check_branch
      %25 = sbr.rel (0) target = $region13
    $region12: #{tpu_custom_call.1} parent=1 // pred_region
      _
    $region13: #{tpu_custom_call.1} parent=1 // pred_fallthru
      _
    // Predicated region
    $region14: #{tpu_custom_call.1} parent=1 // pred_check
      _
    $region15: #{tpu_custom_call.1} parent=1 // pred_check_branch
      %27 = sbr.rel (0) target = $region17
    $region16: #{tpu_custom_call.1} parent=1 // pred_region
      %28 = dma.done [#allocation3], 2048
    $region17: #{tpu_custom_call.1} parent=1 // pred_fallthru
      _
    %v29 = vld [vmem:[#allocation2] sm:$0xff]
    %v30 = vld [vmem:[#allocation2 + $0x8] sm:$0xff]
    %v31 = vld [vmem:[#allocation2 + $0x10] sm:$0xff]
    %v32 = vld [vmem:[#allocation2 + $0x18] sm:$0xff]
    %v33 = vld [vmem:[#allocation2 + $0x20] sm:$0xff]
    %v34 = vld [vmem:[#allocation2 + $0x28] sm:$0xff]
    %v35 = vld [vmem:[#allocation2 + $0x30] sm:$0xff]
    %v36 = vld [vmem:[#allocation2 + $0x38] sm:$0xff]
    %v37 = vld [vmem:[#allocation2 + $0x40] sm:$0xff]
    %v38 = vld [vmem:[#allocation2 + $0x48] sm:$0xff]
    %v39 = vld [vmem:[#allocation2 + $0x50] sm:$0xff]
    %v40 = vld [vmem:[#allocation2 + $0x58] sm:$0xff]
    %v41 = vld [vmem:[#allocation2 + $0x60] sm:$0xff]
    %v42 = vld [vmem:[#allocation2 + $0x68] sm:$0xff]
    %v43 = vld [vmem:[#allocation2 + $0x70] sm:$0xff]
    %v44 = vld [vmem:[#allocation2 + $0x78] sm:$0xff]
    %v45 = vadd.f32 %v29, %v30
    %46 = vadd.xlane.f32.xlu0 %v45
    %v47 = vpop.xlane.xlu0 %46
    %v48 = vadd.f32 %v31, %v32
    %49 = vadd.xlane.f32.xlu0 %v48
    %v50 = vpop.xlane.xlu0 %49
    %v51 = vadd.f32 %v33, %v34
    %52 = vadd.xlane.f32.xlu0 %v51
    %v53 = vpop.xlane.xlu0 %52
    %v54 = vadd.f32 %v35, %v36
    %55 = vadd.xlane.f32.xlu0 %v54
    %v56 = vpop.xlane.xlu0 %55
    %v57 = vadd.f32 %v37, %v38
    %58 = vadd.xlane.f32.xlu0 %v57
    %v59 = vpop.xlane.xlu0 %58
    %v60 = vadd.f32 %v39, %v40
    %61 = vadd.xlane.f32.xlu0 %v60
    %v62 = vpop.xlane.xlu0 %61
    %v63 = vadd.f32 %v41, %v42
    %64 = vadd.xlane.f32.xlu0 %v63
    %v65 = vpop.xlane.xlu0 %64
    %v66 = vadd.f32 %v43, %v44
    %67 = vadd.xlane.f32.xlu0 %v66
    %v68 = vpop.xlane.xlu0 %67
    %v69 = vadd.f32 %v47, 0.0
    %v70 = vadd.f32 %v50, 0.0
    %v71 = vadd.f32 %v53, 0.0
    %v72 = vadd.f32 %v56, 0.0
    %v73 = vadd.f32 %v59, 0.0
    %v74 = vadd.f32 %v62, 0.0
    %v75 = vadd.f32 %v65, 0.0
    %v76 = vadd.f32 %v68, 0.0
    %v77 = vmul.f32 %v69, 0.00390625
    %v78 = vmul.f32 %v70, 0.00390625
    %v79 = vmul.f32 %v71, 0.00390625
    %v80 = vmul.f32 %v72, 0.00390625
    %v81 = vmul.f32 %v73, 0.00390625
    %v82 = vmul.f32 %v74, 0.00390625
    %v83 = vmul.f32 %v75, 0.00390625
    %v84 = vmul.f32 %v76, 0.00390625
    %v85 = vld [vmem:[%s1] sm:$0x3]
    %v86 = vld [vmem:[%s2] sm:$0x3]
    %v87 = vlaneseq
    %v88 = vshrl.u32 %v87, 7
    %v89 = vsub.s32 0, %v88
    %v90 = vrot.slane %v85, %v89
    %93 = vbcast.lane.b32.xlu0 %v90, 256
    %v94 = vpop.permute.xlu0 %93
    %s96 = sor.u32 256, 8
    %97 = vbcast.lane.b32.xlu0 %v90, %s96
    %v98 = vpop.permute.xlu0 %97
    %s100 = sor.u32 256, 16
    %101 = vbcast.lane.b32.xlu0 %v90, %s100
    %v102 = vpop.permute.xlu0 %101
    %s104 = sor.u32 256, 24
    %105 = vbcast.lane.b32.xlu0 %v90, %s104
    %v106 = vpop.permute.xlu0 %105
    %v111 = vmul.f32 %v77, %v94
    %v112 = vmul.f32 %v78, %v98
    %v113 = vmul.f32 %v79, %v102
    %v114 = vmul.f32 %v80, %v106
    %v115 = vmul.f32 %v81, %v94
    %v116 = vmul.f32 %v82, %v98
    %v117 = vmul.f32 %v83, %v102
    %v118 = vmul.f32 %v84, %v106
    %127 = vset.pattern.permute.xlu0 0
    %128 = vperm.xlu0 %127, %v111
    %v129 = vpop.permute.xlu0 %128
    %130 = vset.pattern.permute.xlu0 0
    %131 = vperm.xlu0 %130, %v112
    %v132 = vpop.permute.xlu0 %131
    %133 = vset.pattern.permute.xlu0 0
    %134 = vperm.xlu0 %133, %v113
    %v135 = vpop.permute.xlu0 %134
    %136 = vset.pattern.permute.xlu0 0
    %137 = vperm.xlu0 %136, %v114
    %v138 = vpop.permute.xlu0 %137
    %139 = vset.pattern.permute.xlu0 0
    %140 = vperm.xlu0 %139, %v115
    %v141 = vpop.permute.xlu0 %140
    %142 = vset.pattern.permute.xlu0 0
    %143 = vperm.xlu0 %142, %v116
    %v144 = vpop.permute.xlu0 %143
    %145 = vset.pattern.permute.xlu0 0
    %146 = vperm.xlu0 %145, %v117
    %v147 = vpop.permute.xlu0 %146
    %148 = vset.pattern.permute.xlu0 0
    %149 = vperm.xlu0 %148, %v118
    %v150 = vpop.permute.xlu0 %149
    %v151 = vlaneseq
    %v152 = vand.u32 %v151, 127
    %v153 = vlaneseq
    %v154 = vshrl.u32 %v153, 7
    %v155 = vsub.s32 %v152, %v154
    %v156 = vrot.slane %v129, %v155
    %v157 = vadd.s32 %v152, 4294967288
    %v158 = vlaneseq
    %v159 = vshrl.u32 %v158, 7
    %v160 = vsub.s32 %v157, %v159
    %v161 = vrot.slane %v132, %v160
    %vm162 = vcmask 130112
    %v163 = vsel %vm162, %v161, %v156
    %v164 = vadd.s32 %v152, 4294967280
    %v165 = vlaneseq
    %v166 = vshrl.u32 %v165, 7
    %v167 = vsub.s32 %v164, %v166
    %v168 = vrot.slane %v135, %v167
    %vm169 = vcmask 195712
    %v170 = vsel %vm169, %v168, %v163
    %v171 = vadd.s32 %v152, 4294967272
    %v172 = vlaneseq
    %v173 = vshrl.u32 %v172, 7
    %v174 = vsub.s32 %v171, %v173
    %v175 = vrot.slane %v138, %v174
    %vm176 = vcmask 261312
    %v177 = vsel %vm176, %v175, %v170
    %v178 = vlaneseq
    %v179 = vshrl.u32 %v178, 7
    %v180 = vsub.s32 %v152, %v179
    %v181 = vrot.slane %v141, %v180
    %v182 = vlaneseq
    %v183 = vshrl.u32 %v182, 7
    %v184 = vsub.s32 %v157, %v183
    %v185 = vrot.slane %v144, %v184
    %v186 = vsel %vm162, %v185, %v181
    %v187 = vlaneseq
    %v188 = vshrl.u32 %v187, 7
    %v189 = vsub.s32 %v164, %v188
    %v190 = vrot.slane %v147, %v189
    %v191 = vsel %vm169, %v190, %v186
    %v192 = vlaneseq
    %v193 = vshrl.u32 %v192, 7
    %v194 = vsub.s32 %v171, %v193
    %v195 = vrot.slane %v150, %v194
    %v196 = vsel %vm176, %v195, %v191
    %vm197 = vcmask 1041409
    %v198 = vsel %vm197, %v196, %v177
    %vm200 = vcmask 254976
    %v201 = vsel %vm200, %v198, 0.0
    %202 = vadd.xlane.f32.xlu0 %v201
    %v203 = vpop.xlane.xlu0 %202
    %v204 = vmax.f32 %v203, 0.0
    %v205 = vlaneseq
    %v206 = vshrl.u32 %v205, 7
    %v207 = vsub.s32 0, %v206
    %v208 = vrot.slane %v86, %v207
    %v209 = vmul.f32 %v204, %v208
    %v210 = vadd.f32 %v209, 0.0
    %v211 = vlaneseq
    %v212 = vshrl.u32 %v211, 7
    %v213 = vsub.s32 1, %v212
    %v214 = vrot.slane %v85, %v213
    %217 = vbcast.lane.b32.xlu0 %v214, 256
    %v218 = vpop.permute.xlu0 %217
    %s220 = sor.u32 256, 8
    %221 = vbcast.lane.b32.xlu0 %v214, %s220
    %v222 = vpop.permute.xlu0 %221
    %s224 = sor.u32 256, 16
    %225 = vbcast.lane.b32.xlu0 %v214, %s224
    %v226 = vpop.permute.xlu0 %225
    %s228 = sor.u32 256, 24
    %229 = vbcast.lane.b32.xlu0 %v214, %s228
    %v230 = vpop.permute.xlu0 %229
    %v235 = vmul.f32 %v77, %v218
    %v236 = vmul.f32 %v78, %v222
    %v237 = vmul.f32 %v79, %v226
    %v238 = vmul.f32 %v80, %v230
    %v239 = vmul.f32 %v81, %v218
    %v240 = vmul.f32 %v82, %v222
    %v241 = vmul.f32 %v83, %v226
    %v242 = vmul.f32 %v84, %v230
    %251 = vset.pattern.permute.xlu0 0
    %252 = vperm.xlu0 %251, %v235
    %v253 = vpop.permute.xlu0 %252
    %254 = vset.pattern.permute.xlu0 0
    %255 = vperm.xlu0 %254, %v236
    %v256 = vpop.permute.xlu0 %255
    %257 = vset.pattern.permute.xlu0 0
    %258 = vperm.xlu0 %257, %v237
    %v259 = vpop.permute.xlu0 %258
    %260 = vset.pattern.permute.xlu0 0
    %261 = vperm.xlu0 %260, %v238
    %v262 = vpop.permute.xlu0 %261
    %263 = vset.pattern.permute.xlu0 0
    %264 = vperm.xlu0 %263, %v239
    %v265 = vpop.permute.xlu0 %264
    %266 = vset.pattern.permute.xlu0 0
    %267 = vperm.xlu0 %266, %v240
    %v268 = vpop.permute.xlu0 %267
    %269 = vset.pattern.permute.xlu0 0
    %270 = vperm.xlu0 %269, %v241
    %v271 = vpop.permute.xlu0 %270
    %272 = vset.pattern.permute.xlu0 0
    %273 = vperm.xlu0 %272, %v242
    %v274 = vpop.permute.xlu0 %273
    %v275 = vlaneseq
    %v276 = vshrl.u32 %v275, 7
    %v277 = vsub.s32 %v152, %v276
    %v278 = vrot.slane %v253, %v277
    %v279 = vlaneseq
    %v280 = vshrl.u32 %v279, 7
    %v281 = vsub.s32 %v157, %v280
    %v282 = vrot.slane %v256, %v281
    %v283 = vsel %vm162, %v282, %v278
    %v284 = vlaneseq
    %v285 = vshrl.u32 %v284, 7
    %v286 = vsub.s32 %v164, %v285
    %v287 = vrot.slane %v259, %v286
    %v288 = vsel %vm169, %v287, %v283
    %v289 = vlaneseq
    %v290 = vshrl.u32 %v289, 7
    %v291 = vsub.s32 %v171, %v290
    %v292 = vrot.slane %v262, %v291
    %v293 = vsel %vm176, %v292, %v288
    %v294 = vlaneseq
    %v295 = vshrl.u32 %v294, 7
    %v296 = vsub.s32 %v152, %v295
    %v297 = vrot.slane %v265, %v296
    %v298 = vlaneseq
    %v299 = vshrl.u32 %v298, 7
    %v300 = vsub.s32 %v157, %v299
    %v301 = vrot.slane %v268, %v300
    %v302 = vsel %vm162, %v301, %v297
    %v303 = vlaneseq
    %v304 = vshrl.u32 %v303, 7
    %v305 = vsub.s32 %v164, %v304
    %v306 = vrot.slane %v271, %v305
    %v307 = vsel %vm169, %v306, %v302
    %v308 = vlaneseq
    %v309 = vshrl.u32 %v308, 7
    %v310 = vsub.s32 %v171, %v309
    %v311 = vrot.slane %v274, %v310
    %v312 = vsel %vm176, %v311, %v307
    %v313 = vsel %vm197, %v312, %v293
    %v315 = vsel %vm200, %v313, 0.0
    %316 = vadd.xlane.f32.xlu0 %v315
    %v317 = vpop.xlane.xlu0 %316
    %v318 = vmax.f32 %v317, 0.0
    %v319 = vlaneseq
    %v320 = vshrl.u32 %v319, 7
    %v321 = vsub.s32 1, %v320
    %v322 = vrot.slane %v86, %v321
    %v323 = vmul.f32 %v318, %v322
    %v324 = vadd.f32 %v210, %v323
    %v325 = vxor.u32 %v324, 2147483648
    %v326 = vmul.f32 %v325, 1.442695
    %v327 = vpow.pop %v326
    %v328 = vadd.f32 %v327, 1.0
    %v329 = vrcp.pop %v328
    %v330 = vmul.f32 1.0, %v329
    %v331 = vlaneseq
    %v332 = vshrl.u32 %v331, 7
    %v333 = vsub.s32 0, %v332
    %v334 = vrot.slane %v330, %v333
    %336 = vbcast.lane.b32.xlu0 %v334, 256
    %v337 = vpop.permute.xlu0 %336
    %s339 = sor.u32 256, 8
    %340 = vbcast.lane.b32.xlu0 %v334, %s339
    %v341 = vpop.permute.xlu0 %340
    %s343 = sor.u32 256, 16
    %344 = vbcast.lane.b32.xlu0 %v334, %s343
    %v345 = vpop.permute.xlu0 %344
    %s347 = sor.u32 256, 24
    %348 = vbcast.lane.b32.xlu0 %v334, %s347
    %v349 = vpop.permute.xlu0 %348
    %v350 = vlaneseq
    %v351 = vshrl.u32 %v350, 7
    %v352 = vsub.s32 1, %v351
    %v353 = vrot.slane %v330, %v352
    %355 = vbcast.lane.b32.xlu0 %v353, 256
    %v356 = vpop.permute.xlu0 %355
    %s358 = sor.u32 256, 8
    %359 = vbcast.lane.b32.xlu0 %v353, %s358
    %v360 = vpop.permute.xlu0 %359
    %s362 = sor.u32 256, 16
    %363 = vbcast.lane.b32.xlu0 %v353, %s362
    %v364 = vpop.permute.xlu0 %363
    %s366 = sor.u32 256, 24
    %367 = vbcast.lane.b32.xlu0 %v353, %s366
    %v368 = vpop.permute.xlu0 %367
    %v369 = vmul.f32 %v29, %v337
    %v370 = vmul.f32 %v30, %v337
    %v371 = vmul.f32 %v31, %v341
    %v372 = vmul.f32 %v32, %v341
    %v373 = vmul.f32 %v33, %v345
    %v374 = vmul.f32 %v34, %v345
    %v375 = vmul.f32 %v35, %v349
    %v376 = vmul.f32 %v36, %v349
    %v377 = vmul.f32 %v37, %v356
    %v378 = vmul.f32 %v38, %v356
    %v379 = vmul.f32 %v39, %v360
    %v380 = vmul.f32 %v40, %v360
    %v381 = vmul.f32 %v41, %v364
    %v382 = vmul.f32 %v42, %v364
    %v383 = vmul.f32 %v43, %v368
    %v384 = vmul.f32 %v44, %v368
    %385 = vst [vmem:[#allocation5] sm:$0xff] %v369
    %386 = vst [vmem:[#allocation5 + $0x8] sm:$0xff] %v370
    %387 = vst [vmem:[#allocation5 + $0x10] sm:$0xff] %v371
    %388 = vst [vmem:[#allocation5 + $0x18] sm:$0xff] %v372
    %389 = vst [vmem:[#allocation5 + $0x20] sm:$0xff] %v373
    %390 = vst [vmem:[#allocation5 + $0x28] sm:$0xff] %v374
    %391 = vst [vmem:[#allocation5 + $0x30] sm:$0xff] %v375
    %392 = vst [vmem:[#allocation5 + $0x38] sm:$0xff] %v376
    %393 = vst [vmem:[#allocation5 + $0x40] sm:$0xff] %v377
    %394 = vst [vmem:[#allocation5 + $0x48] sm:$0xff] %v378
    %395 = vst [vmem:[#allocation5 + $0x50] sm:$0xff] %v379
    %396 = vst [vmem:[#allocation5 + $0x58] sm:$0xff] %v380
    %397 = vst [vmem:[#allocation5 + $0x60] sm:$0xff] %v381
    %398 = vst [vmem:[#allocation5 + $0x68] sm:$0xff] %v382
    %399 = vst [vmem:[#allocation5 + $0x70] sm:$0xff] %v383
    %400 = vst [vmem:[#allocation5 + $0x78] sm:$0xff] %v384
    // Predicated region
    $region18: #{tpu_custom_call.1} parent=1 // pred_check
      _
    $region19: #{tpu_custom_call.1} parent=1 // pred_check_branch
      %402 = sbr.rel (0) target = $region21
    $region20: #{tpu_custom_call.1} parent=1 // pred_region
      %s404 = ssub.s32 2048, 2048
      %405 = vsyncadd [#allocation4], %s404
      %s406 = sshll.u32 [#allocation5], 4
      %s407 = int_to_ptr.vmem [resolvable:$true] %s406
      %412 = dma.vmem_to_hbm [thread:$0]  %s407, 2048, %s3, [#allocation4], 256, 256, 16
    $region21: #{tpu_custom_call.1} parent=1 // pred_fallthru
      _
    // Predicated region
    $region22: #{tpu_custom_call.1} parent=1 // pred_check
      _
    $region23: #{tpu_custom_call.1} parent=1 // pred_check_branch
      %414 = sbr.rel (0) target = $region25
    $region24: #{tpu_custom_call.1} parent=1 // pred_region
      %415 = dma.done [#allocation4], 2048
    $region25: #{tpu_custom_call.1} parent=1 // pred_fallthru
      _
    %416 = vsyncpa [#allocation3], 1
    %417 = vsyncpa [#allocation4], 1

</llo_original>
